<compile_context>
chip_gen: v7x
topology: tpu7x:2x2x1
jax: 0.10.0
libtpu: 0.0.40
codegen_flags: <defaults>
</compile_context>

<pallas_src>
import functools

import jax
import jax.numpy as jnp
from jax import lax
from jax.experimental import pallas as pl
from jax.experimental.pallas import tpu as pltpu

_LANE = 128
_VMEM_WORKSET_BYTES = 16 * 1024 * 1024   # 2 inputs x 2 pipeline buffers x block
_VMEM_LIMIT_BYTES = 32 * 1024 * 1024     # explicit scoped-VMEM limit (ok on all chips)


def _round_up(x, m):
    return ((x + m - 1) // m) * m


def _sublane(dtype):
    return 8 if dtype == jnp.float32 else 16   # bf16 packs two rows per sublane


# ---------------------------------------------------------------------------
# Fast path: C == 2, lane-dense (R, 128) layout, pairwise softplus.
# ---------------------------------------------------------------------------
def _loss_c2_kernel(posi_ref, nega_ref, out_ref, *, n_valid, tile_rows):
    x_p = posi_ref[...]                      # (TR, 128)
    x_n = nega_ref[...]
    if x_p.dtype != jnp.float32:             # skip redundant cast for f32 inputs
        x_p = x_p.astype(jnp.float32)
    if x_n.dtype != jnp.float32:
        x_n = x_n.astype(jnp.float32)

    # Adjacent lanes hold one row's (x0, x1).  partner[j] = x[(j + 1) mod 128];
    # only even lanes are kept, so the wrap at lane 127 is harmless.
    part_p = pltpu.roll(x_p, shift=_LANE - 1, axis=1)
    part_n = pltpu.roll(x_n, shift=_LANE - 1, axis=1)

    def softplus(d):
        # Stable: max(d, 0) + log(1 + exp(-|d|));  exp/log run on the EUP slot.
        return jnp.maximum(d, 0.0) + jnp.log(1.0 + jnp.exp(-jnp.abs(d)))

    # posi rows target class 1: -log_softmax([x0, x1])[1] = softplus(x0 - x1)
    # nega rows target class 0: -log_softmax([x0, x1])[0] = softplus(x1 - x0)
    nll = softplus(x_p - part_p) + softplus(part_n - x_n)   # valid at even lanes

    lane = lax.broadcasted_iota(jnp.int32, nll.shape, 1)
    row = lax.broadcasted_iota(jnp.int32, nll.shape, 0) + pl.program_id(0) * tile_rows
    flat = row * _LANE + lane
    keep = jnp.logical_and((lane & 1) == 0, flat < n_valid)
    # True select (NOT multiply-by-mask): padded lanes may hold Inf/NaN garbage.
    nll = jnp.where(keep, nll, 0.0)

    per_row = jnp.sum(nll, axis=1, keepdims=True)            # (TR, 1)
    out_ref[0] = jnp.sum(per_row, axis=0, keepdims=True)     # (1, 1) partial


def _pick_tile_rows(num_rows, dtype):
    """Rows per (TR, 128) block: big (per-step overhead dominates) but budgeted."""
    sub = _sublane(dtype)
    tr = _VMEM_WORKSET_BYTES // (2 * 2 * _LANE * 4)   # 2 inputs x 2 buffers, f32
    tr = max(sub, (tr // sub) * sub)
    if num_rows > sub:
        # Cap near half the rows so v7x's two TensorCores both get a tile.
        tr = min(tr, _round_up(pl.cdiv(num_rows, 2), sub))
    if tr >= num_rows:
        return num_rows            # single block == full array dims (always legal)
    return tr


def _loss_c2(posi, nega, batch):
    n_valid = 2 * batch
    rows = max(8, pl.cdiv(n_valid, _LANE))   # at least one native (8, 128) tile
    padded = rows * _LANE

    def lane_dense(x):
        flat = x.reshape(n_valid)            # row-major -> free metadata reshape
        if padded != n_valid:                # only when 2B isn't lane-aligned
            flat = jnp.pad(flat, (0, padded - n_valid))
        return flat.reshape(rows, _LANE)

    p2 = lane_dense(posi)
    n2 = lane_dense(nega)

    tr = _pick_tile_rows(rows, posi.dtype)
    num_tiles = pl.cdiv(rows, tr)

    partials = pl.pallas_call(
        functools.partial(_loss_c2_kernel, n_valid=n_valid, tile_rows=tr),
        out_shape=jax.ShapeDtypeStruct((num_tiles, 1, 1), jnp.float32),
        grid=(num_tiles,),
        in_specs=[
            pl.BlockSpec((tr, _LANE), lambda i: (i, 0)),
            pl.BlockSpec((tr, _LANE), lambda i: (i, 0)),
        ],
        out_specs=pl.BlockSpec((1, 1, 1), lambda i: (i, 0, 0)),
        compiler_params=pltpu.CompilerParams(
            dimension_semantics=("parallel",),
            vmem_limit_bytes=_VMEM_LIMIT_BYTES),
    )(p2, n2)

    # Tiny final reduction + normalization by the TOTAL number of rows (2B),
    # applied exactly once (never per tile).
    return jnp.sum(partials) / jnp.float32(n_valid)


# ---------------------------------------------------------------------------
# General path: any C >= 2, (TB, C) blocks, closed-form NLL.
# ---------------------------------------------------------------------------
def _loss_general_kernel(posi_ref, nega_ref, out_ref, *, batch_total, tile_b):
    x_p = posi_ref[...]                      # (TB, C)
    x_n = nega_ref[...]
    if x_p.dtype != jnp.float32:
        x_p = x_p.astype(jnp.float32)
    if x_n.dtype != jnp.float32:
        x_n = x_n.astype(jnp.float32)

    def lse(x):  # row-wise max-shifted logsumexp: (TB, C) -> (TB, 1)
        m = jnp.max(x, axis=-1, keepdims=True)
        return m + jnp.log(jnp.sum(jnp.exp(x - m), axis=-1, keepdims=True))

    # -log_softmax(x)[t] == logsumexp(x) - x[:, t]; posi -> class 1, nega -> class 0.
    nll = (lse(x_p) - x_p[:, 1:2]) + (lse(x_n) - x_n[:, 0:1])   # (TB, 1)

    if batch_total % tile_b != 0:
        # Mask rows of the ragged last tile (true select, never multiply-by-mask).
        row = pl.program_id(0) * tile_b + lax.broadcasted_iota(jnp.int32, nll.shape, 0)
        nll = jnp.where(row < batch_total, nll, 0.0)

    out_ref[0] = jnp.sum(nll, axis=0, keepdims=True)            # (1, 1) partial


def _pick_tile_b(batch, num_classes, dtype):
    sub = _sublane(dtype)
    c_pad = _round_up(num_classes, _LANE)    # lane padding of a (TB, C) VMEM block
    tb = _VMEM_WORKSET_BYTES // (2 * 2 * c_pad * 4)
    tb = max(sub, (tb // sub) * sub)
    if batch > sub:
        tb = min(tb, _round_up(pl.cdiv(batch, 2), sub))   # >= 2 tiles for v7x
    if tb >= batch:
        return batch              # single full-batch block (always a legal shape)
    return tb


def _loss_general(posi, nega, batch, num_classes):
    tb = _pick_tile_b(batch, num_classes, posi.dtype)
    num_tiles = pl.cdiv(batch, tb)

    partials = pl.pallas_call(
        functools.partial(_loss_general_kernel, batch_total=batch, tile_b=tb),
        out_shape=jax.ShapeDtypeStruct((num_tiles, 1, 1), jnp.float32),
        grid=(num_tiles,),
        in_specs=[
            pl.BlockSpec((tb, num_classes), lambda i: (i, 0)),
            pl.BlockSpec((tb, num_classes), lambda i: (i, 0)),
        ],
        out_specs=pl.BlockSpec((1, 1, 1), lambda i: (i, 0, 0)),
        compiler_params=pltpu.CompilerParams(
            dimension_semantics=("parallel",),
            vmem_limit_bytes=_VMEM_LIMIT_BYTES),
    )(posi, nega)

    return jnp.sum(partials) / jnp.float32(2 * batch)


# ---------------------------------------------------------------------------
# Public entry point (LossAVMatch.forward).
# ---------------------------------------------------------------------------
def loss_av_match(out_match_posi: jax.Array, out_match_nega: jax.Array) -> jax.Array:
    """Pallas implementation of LossAVMatch.forward. Inputs: (B, C) each, C >= 2."""
    assert out_match_posi.shape == out_match_nega.shape
    B, C = out_match_posi.shape
    assert C >= 2, "cross-entropy targets use classes {0, 1}"
    if C == 2:
        return _loss_c2(out_match_posi, out_match_nega, B)
    return _loss_general(out_match_posi, out_match_nega, B, C)


def _reference(posi, nega):
    # Pure-JAX reference mirroring the PyTorch module (interleave + cross_entropy).
    B, C = posi.shape
    pred = jnp.zeros((2 * B, C), jnp.float32)
    pred = pred.at[0::2].set(posi.astype(jnp.float32))
    pred = pred.at[1::2].set(nega.astype(jnp.float32))
    target = jnp.zeros((2 * B,), jnp.int32).at[0::2].set(1)
    logp = jax.nn.log_softmax(pred, axis=-1)
    return -jnp.mean(jnp.take_along_axis(logp, target[:, None], axis=-1))


if __name__ == "__main__":
    key = jax.random.PRNGKey(0)
    k1, k2, k3, k4, k5, k6 = jax.random.split(key, 6)

    # Primary case: matches the module's realistic use (B rows, 2 match classes).
    B, C = 8, 2
    out_match_posi = jax.random.normal(k1, (B, C), dtype=jnp.float32)
    out_match_nega = jax.random.normal(k2, (B, C), dtype=jnp.float32)
    loss = loss_av_match(out_match_posi, out_match_nega)
    jax.block_until_ready(loss)
    ref = _reference(out_match_posi, out_match_nega)
    assert jnp.allclose(loss, ref, atol=1e-5, rtol=1e-5), (loss, ref)

    # Larger C==2 batch: exercises lane-dense padding + in-kernel masking.
    p2 = jax.random.normal(k3, (200, 2), dtype=jnp.float32)
    n2 = jax.random.normal(k4, (200, 2), dtype=jnp.float32)
    loss2 = loss_av_match(p2, n2)
    jax.block_until_ready(loss2)
    assert jnp.allclose(loss2, _reference(p2, n2), atol=1e-5, rtol=1e-5)

    # General-C fallback path.
    p3 = jax.random.normal(k5, (6, 4), dtype=jnp.float32)
    n3 = jax.random.normal(k6, (6, 4), dtype=jnp.float32)
    loss3 = loss_av_match(p3, n3)
    jax.block_until_ready(loss3)
    assert jnp.allclose(loss3, _reference(p3, n3), atol=1e-5, rtol=1e-5)

    print("KERNEL_OK")
</pallas_src>

<mosaic_0001>
module attributes {stable_mosaic.version = 11 : i64} {
  func.func @_loss_c2_kernel(%arg0: i32, %arg1: memref<8x128xf32, #tpu.memory_space<vmem>>, %arg2: memref<8x128xf32, #tpu.memory_space<vmem>>, %arg3: memref<1x1x1xf32, #tpu.memory_space<vmem>>) attributes {dimension_semantics = [#tpu.dimension_semantics<parallel>], iteration_bounds = array<i64: 1>, scalar_prefetch = 0 : i64, scratch_operands = 0 : i64, tpu.core_type = #tpu.core_type<tc>, window_params = [{transform_indices = @transform_0, window_bounds = array<i64: 8, 128>}, {transform_indices = @transform_1, window_bounds = array<i64: 8, 128>}, {transform_indices = @transform_2, window_bounds = array<i64: 1, 1, 1>}]} {
    %c0 = arith.constant 0 : index
    %c0_0 = arith.constant 0 : index
    %0 = vector.load %arg1[%c0, %c0_0] : memref<8x128xf32, #tpu.memory_space<vmem>>, vector<8x128xf32>
    %c0_1 = arith.constant 0 : index
    %c0_2 = arith.constant 0 : index
    %1 = vector.load %arg2[%c0_1, %c0_2] : memref<8x128xf32, #tpu.memory_space<vmem>>, vector<8x128xf32>
    %c127_i32 = arith.constant 127 : i32
    %2 = tpu.dynamic_rotate %0 by %c127_i32 dim 1 : vector<8x128xf32>, i32 -> vector<8x128xf32>
    %c127_i32_3 = arith.constant 127 : i32
    %3 = tpu.dynamic_rotate %1 by %c127_i32_3 dim 1 : vector<8x128xf32>, i32 -> vector<8x128xf32>
    %4 = arith.subf %0, %2 : vector<8x128xf32>
    %cst = arith.constant 0.000000e+00 : f32
    %5 = vector.broadcast %cst : f32 to vector<8x128xf32>
    %6 = arith.maximumf %4, %5 : vector<8x128xf32>
    %7 = math.absf %4 : vector<8x128xf32>
    %cst_4 = arith.constant 0.000000e+00 : f32
    %8 = vector.broadcast %cst_4 : f32 to vector<8x128xf32>
    %9 = arith.subf %8, %7 : vector<8x128xf32>
    %10 = math.exp %9 : vector<8x128xf32>
    %cst_5 = arith.constant 1.000000e+00 : f32
    %11 = vector.broadcast %cst_5 : f32 to vector<8x128xf32>
    %12 = arith.addf %11, %10 : vector<8x128xf32>
    %13 = math.log %12 : vector<8x128xf32>
    %14 = arith.addf %6, %13 : vector<8x128xf32>
    %15 = arith.subf %3, %1 : vector<8x128xf32>
    %cst_6 = arith.constant 0.000000e+00 : f32
    %16 = vector.broadcast %cst_6 : f32 to vector<8x128xf32>
    %17 = arith.maximumf %15, %16 : vector<8x128xf32>
    %18 = math.absf %15 : vector<8x128xf32>
    %cst_7 = arith.constant 0.000000e+00 : f32
    %19 = vector.broadcast %cst_7 : f32 to vector<8x128xf32>
    %20 = arith.subf %19, %18 : vector<8x128xf32>
    %21 = math.exp %20 : vector<8x128xf32>
    %cst_8 = arith.constant 1.000000e+00 : f32
    %22 = vector.broadcast %cst_8 : f32 to vector<8x128xf32>
    %23 = arith.addf %22, %21 : vector<8x128xf32>
    %24 = math.log %23 : vector<8x128xf32>
    %25 = arith.addf %17, %24 : vector<8x128xf32>
    %26 = arith.addf %14, %25 : vector<8x128xf32>
    %27 = tpu.iota {dimensions = array<i32: 1>} : vector<8x128xi32>
    %28 = tpu.iota {dimensions = array<i32: 0>} : vector<8x128xi32>
    %c8_i32 = arith.constant 8 : i32
    %29 = arith.muli %arg0, %c8_i32 : i32
    %30 = vector.broadcast %29 : i32 to vector<8x128xi32>
    %31 = arith.addi %28, %30 : vector<8x128xi32>
    %c128_i32 = arith.constant 128 : i32
    %32 = vector.broadcast %c128_i32 : i32 to vector<8x128xi32>
    %33 = arith.muli %31, %32 : vector<8x128xi32>
    %34 = arith.addi %33, %27 : vector<8x128xi32>
    %c1_i32 = arith.constant 1 : i32
    %35 = vector.broadcast %c1_i32 : i32 to vector<8x128xi32>
    %36 = arith.andi %27, %35 : vector<8x128xi32>
    %c0_i32 = arith.constant 0 : i32
    %37 = vector.broadcast %c0_i32 : i32 to vector<8x128xi32>
    %38 = arith.cmpi eq, %36, %37 : vector<8x128xi32>
    %c16_i32 = arith.constant 16 : i32
    %39 = vector.broadcast %c16_i32 : i32 to vector<8x128xi32>
    %40 = arith.cmpi slt, %34, %39 : vector<8x128xi32>
    %41 = arith.andi %38, %40 : vector<8x128xi1>
    %cst_9 = arith.constant 0.000000e+00 : f32
    %42 = vector.broadcast %cst_9 : f32 to vector<8x128xf32>
    %43 = arith.select %41, %26, %42 : vector<8x128xi1>, vector<8x128xf32>
    %cst_10 = arith.constant dense<0.000000e+00> : vector<8xf32>
    %44 = vector.multi_reduction <add>, %43, %cst_10 [1] : vector<8x128xf32> to vector<8xf32>
    %45 = vector.shape_cast %44 : vector<8xf32> to vector<8x1xf32>
    %cst_11 = arith.constant dense<0.000000e+00> : vector<1xf32>
    %46 = vector.multi_reduction <add>, %45, %cst_11 [0] : vector<8x1xf32> to vector<1xf32>
    %47 = vector.shape_cast %46 : vector<1xf32> to vector<1x1xf32>
    %c0_12 = arith.constant 0 : index
    %c0_13 = arith.constant 0 : index
    %c0_14 = arith.constant 0 : index
    %48 = vector.load %arg3[%c0_12, %c0_13, %c0_14] : memref<1x1x1xf32, #tpu.memory_space<vmem>>, vector<1x1x1xf32>
    %49 = vector.shape_cast %48 : vector<1x1x1xf32> to vector<1x1xf32>
    %50 = vector.shape_cast %47 : vector<1x1xf32> to vector<1x1x1xf32>
    tpu.vector_store %arg3[%c0_12, %c0_13, %c0_14], %50 {strides = array<i32>} : memref<1x1x1xf32, #tpu.memory_space<vmem>>, vector<1x1x1xf32>,
    return
  }
  func.func @transform_0(%arg0: i32) -> (i32, i32) {
    %c0_i32 = arith.constant 0 : i32
    %c0_i32_0 = arith.constant 0 : i32
    return %arg0, %c0_i32 : i32, i32
  }
  func.func @transform_1(%arg0: i32) -> (i32, i32) {
    %c0_i32 = arith.constant 0 : i32
    %c0_i32_0 = arith.constant 0 : i32
    return %arg0, %c0_i32 : i32, i32
  }
  func.func @transform_2(%arg0: i32) -> (i32, i32, i32) {
    %c0_i32 = arith.constant 0 : i32
    %c0_i32_0 = arith.constant 0 : i32
    %c0_i32_1 = arith.constant 0 : i32
    return %arg0, %c0_i32, %c0_i32_0 : i32, i32, i32
  }
}

</mosaic_0001>

<llo_original>
// kernel: tpu_custom_call.1
$region0: #{tpu_custom_call.1}
  #allocation0 [shape = 'u32[]', space=smem, size = 0x4, offset = 0x4, fixed_abs, tag = 'smem constant byte address 0x4 - core index']
  #allocation1 [shape = 'u32[144,128]{1,0:T(1,128)}', space=vmem, size = 0x12000, scoped, tag = 'internal scratch']
  %s0 = inlined_call_operand.hbm [shape: f32[8,128], index: 0, kind: input, shape index: {}]
  %s1 = inlined_call_operand.hbm [shape: f32[8,128], index: 1, kind: input, shape index: {}]
  %s2 = inlined_call_operand.hbm [shape: f32[1,1,1], index: 2, kind: output, shape index: {}]
  %s3 = sld [smem:[#allocation0]]
  $region26: #{tpu_custom_call.1} parent=0
    _
  %s5 = ssub.s32 1, %s3
  %s6 = scalar_select 0, %s5, %s3
  $region1: #{tpu_custom_call.1} parent=0
    #allocation2 [shape = 'u8[4096]{0}', space=vmem, size = 0x1000, scoped, tag = 'input window, operand 0, single buffered']
    #allocation3 [shape = 's32[1]{0}', space=sflag, size = 0x4, scoped, tag = 'scoped memory for tpu_custom_call.1']
    #allocation4 [shape = 's32[1]{0}', space=sflag, size = 0x4, scoped, tag = 'scoped memory for tpu_custom_call.1']
    #allocation5 [shape = 'u8[4096]{0}', space=vmem, size = 0x1000, scoped, tag = 'input window, operand 1, single buffered']
    #allocation6 [shape = 's32[1]{0}', space=sflag, size = 0x4, scoped, tag = 'scoped memory for tpu_custom_call.1']
    #allocation7 [shape = 'u8[512]{0}', space=vmem, size = 0x400, scoped, tag = 'output window, operand 0, single buffered']
    %7 = vsyncpa [#allocation3], 0
    %8 = vsyncpa [#allocation6], 0
    %9 = vsyncpa [#allocation4], 0
    // Predicated region
    $region2: #{tpu_custom_call.1} parent=1 // pred_check
      _
    $region3: #{tpu_custom_call.1} parent=1 // pred_check_branch
      %11 = sbr.rel (0) target = $region5
    $region4: #{tpu_custom_call.1} parent=1 // pred_region
      %s13 = ssub.s32 128, 128
      %14 = vsyncadd [#allocation3], %s13
      %s16 = sshll.u32 [#allocation2], 4
      %s17 = int_to_ptr.vmem [resolvable:$true] %s16
      %19 = dma.hbm_to_vmem [thread:$0]  %s0, 128, %s17, [#allocation3]
    $region5: #{tpu_custom_call.1} parent=1 // pred_fallthru
      _
    // Predicated region
    $region6: #{tpu_custom_call.1} parent=1 // pred_check
      _
    $region7: #{tpu_custom_call.1} parent=1 // pred_check_branch
      %21 = sbr.rel (0) target = $region9
    $region8: #{tpu_custom_call.1} parent=1 // pred_region
      %s23 = ssub.s32 128, 128
      %24 = vsyncadd [#allocation6], %s23
      %s26 = sshll.u32 [#allocation5], 4
      %s27 = int_to_ptr.vmem [resolvable:$true] %s26
      %29 = dma.hbm_to_vmem [thread:$0]  %s1, 128, %s27, [#allocation6]
    $region9: #{tpu_custom_call.1} parent=1 // pred_fallthru
      _
    // Predicated region
    $region10: #{tpu_custom_call.1} parent=1 // pred_check
      _
    $region11: #{tpu_custom_call.1} parent=1 // pred_check_branch
      %31 = sbr.rel (0) target = $region13
    $region12: #{tpu_custom_call.1} parent=1 // pred_region
      %32 = dma.done [#allocation3], 128
    $region13: #{tpu_custom_call.1} parent=1 // pred_fallthru
      _
    // Predicated region
    $region14: #{tpu_custom_call.1} parent=1 // pred_check
      _
    $region15: #{tpu_custom_call.1} parent=1 // pred_check_branch
      %34 = sbr.rel (0) target = $region17
    $region16: #{tpu_custom_call.1} parent=1 // pred_region
      %35 = dma.done [#allocation6], 128
    $region17: #{tpu_custom_call.1} parent=1 // pred_fallthru
      _
    %v36 = vld [vmem:[#allocation2] sm:$0xff]
    %v37 = vld [vmem:[#allocation5] sm:$0xff]
    %38 = vrot.lane.b32.xlu0 %v36, 127
    %v39 = vpop.permute.xlu0 %38
    %40 = vrot.lane.b32.xlu0 %v37, 127
    %v41 = vpop.permute.xlu0 %40
    %v42 = vsub.f32 %v36, %v39
    %v43 = vmax.f32 %v42, 0.0
    %v44 = vand.u32 2147483647, %v42
    %v45 = vsub.f32 0.0, %v44
    %v46 = vmul.f32 %v45, 1.442695
    %v47 = vpow.pop %v46
    %v48 = vadd.f32 %v47, 1.0
    %v49 = vlog2.pop %v48
    %v50 = vmul.f32 %v49, 0.6931472
    %v51 = vadd.f32 %v43, %v50
    %v52 = vsub.f32 %v41, %v37
    %v53 = vmax.f32 %v52, 0.0
    %v54 = vand.u32 2147483647, %v52
    %v55 = vsub.f32 0.0, %v54
    %v56 = vmul.f32 %v55, 1.442695
    %v57 = vpow.pop %v56
    %v58 = vadd.f32 %v57, 1.0
    %v59 = vlog2.pop %v58
    %v60 = vmul.f32 %v59, 0.6931472
    %v61 = vadd.f32 %v53, %v60
    %v62 = vadd.f32 %v51, %v61
    %v63 = vlaneseq
    %v64 = vand.u32 %v63, 127
    %v65 = vlaneseq
    %v66 = vshrl.u32 %v65, 7
    %s67 = smul.u32 0, 8
    %v68 = vstv %s67
    %v69 = vadd.s32 %v66, %v68
    %v70 = vmul.u32 %v69, 128
    %v71 = vadd.s32 %v70, %v64
    %v72 = vand.u32 %v64, 1
    %vm73 = vcmp.eq.s32.totalorder %v72, 0
    %vm74 = vcmp.lt.s32.totalorder %v71, 16
    %vm75 = vmand %vm73, %vm74
    %v76 = vsel %vm75, %v62, 0.0
    %77 = vadd.xlane.f32.xlu0 %v76
    %v78 = vpop.xlane.xlu0 %77
    %v79 = vrot.slane %v78, 4
    %v80 = vadd.f32 %v78, %v79
    %v81 = vrot.slane %v80, 2
    %v82 = vadd.f32 %v80, %v81
    %v83 = vrot.slane %v82, 1
    %v84 = vadd.f32 %v82, %v83
    %vm85 = vcmask 0
    %86 = vst.msk [vmem:[#allocation7] sm:$0x1] %vm85, %v84
    // Predicated region
    $region18: #{tpu_custom_call.1} parent=1 // pred_check
      _
    $region19: #{tpu_custom_call.1} parent=1 // pred_check_branch
      %88 = sbr.rel (0) target = $region21
    $region20: #{tpu_custom_call.1} parent=1 // pred_region
      %s90 = ssub.s32 16, 16
      %91 = vsyncadd [#allocation4], %s90
      %s93 = sshll.u32 [#allocation7], 4
      %s94 = int_to_ptr.vmem [resolvable:$true] %s93
      %96 = dma.vmem_to_hbm [thread:$0]  %s94, 16, %s2, [#allocation4]
    $region21: #{tpu_custom_call.1} parent=1 // pred_fallthru
      _
    // Predicated region
    $region22: #{tpu_custom_call.1} parent=1 // pred_check
      _
    $region23: #{tpu_custom_call.1} parent=1 // pred_check_branch
      %98 = sbr.rel (0) target = $region25
    $region24: #{tpu_custom_call.1} parent=1 // pred_region
      %99 = dma.done [#allocation4], 16
    $region25: #{tpu_custom_call.1} parent=1 // pred_fallthru
      _
    %100 = vsyncpa [#allocation3], 1
    %101 = vsyncpa [#allocation6], 1
    %102 = vsyncpa [#allocation4], 1

</llo_original>
